<compile_context>
chip_gen: v6e
topology: v6e:2x2x1
jax: 0.10.0
libtpu: 0.0.40
codegen_flags: <defaults>
</compile_context>

<pallas_src>
import jax
import jax.numpy as jnp
from jax import lax
from jax.experimental import pallas as pl
from jax.experimental.pallas import tpu as pltpu


def _random_shift_kernel(shift_ref, x_ref, o_ref):
    """shift_ref: SMEM int32[2] = (dy, dx), each in [-pad, pad].

    x_ref / o_ref: one (c_blk, H, W) channel block.
    """
    cb, h, w = o_ref.shape
    dy = shift_ref[0]
    dx = shift_ref[1]

    # bf16 inputs keep a bf16 MXU path (native on v6e/v7x); everything else is
    # f32.  Exact either way: the matrices are one-hot row/column selections.
    # TODO(synk): int32 inputs with |x| > 2^24 would lose precision on this
    # f32 selection path; none occur for image data.
    cdt = jnp.bfloat16 if o_ref.dtype == jnp.bfloat16 else jnp.float32

    # Row gather as a one-hot matrix: R[i, k] = 1 iff k == clamp(i + dy, 0, H-1).
    row_out = lax.broadcasted_iota(jnp.int32, (h, h), 0)
    row_src = lax.broadcasted_iota(jnp.int32, (h, h), 1)
    r_mat = (row_src == jnp.clip(row_out + dy, 0, h - 1)).astype(cdt)

    # Column gather as a one-hot matrix: S[k, j] = 1 iff k == clamp(j + dx, 0, W-1).
    col_src = lax.broadcasted_iota(jnp.int32, (w, w), 0)
    col_out = lax.broadcasted_iota(jnp.int32, (w, w), 1)
    s_mat = (col_src == jnp.clip(col_out + dx, 0, w - 1)).astype(cdt)

    x = x_ref[...].astype(cdt)                                     # (cb, h, w)

    # Column shift for the whole block: one (cb*H, W) @ (W, W) matmul.
    xc = jnp.dot(x.reshape(cb * h, w), s_mat,
                 preferred_element_type=jnp.float32)
    xc = xc.astype(cdt).reshape(cb, h, w)

    # Row shift as one batched matmul (channel = batch dim -> output is already
    # (cb, h, w); no transpose gets lowered).
    r_b = jnp.broadcast_to(r_mat, (cb, h, h))
    out = jnp.einsum('chk,ckw->chw', r_b, xc,
                     preferred_element_type=jnp.float32)
    o_ref[...] = out.astype(o_ref.dtype)


def _channel_block(c, h, w, itemsize):
    """Largest channel block (divisor of C) whose footprint stays small.

    Budget ~2 MiB of f32-equivalent input per block so that the double-buffered
    in/out blocks plus in-kernel f32 temporaries stay well inside the default
    scoped-VMEM limits on v5e (16 MiB), v6e (32 MiB) and v7x (32 of 64 MiB).
    For typical images (e.g. 9 x 224 x 224 f32 ~ 1.8 MiB) this is all channels
    in a single grid step.
    """
    budget = 2 << 20
    per_ch = h * w * max(int(itemsize), 4)
    max_cb = max(1, budget // per_ch)
    if c <= max_cb:
        return c
    best = 1
    for d in range(1, c + 1):
        if c % d == 0 and d <= max_cb:
            best = d
    return best


def random_shifts_aug(x, pad, *, key=None, shift=None):
    """Forward pass of RandomShiftsAug for a single (C, H, W) image.

    Pass either a jax.random `key` (a fresh integer shift in [0, 2*pad] is
    sampled on-device, matching torch.randint in the module) or an explicit
    int32 `shift = (sy, sx)` for deterministic testing.
    """
    c, h, w = x.shape
    assert h == w, "RandomShiftsAug requires square images"
    if shift is None:
        if key is None:
            raise ValueError("provide either `key` or `shift`")
        shift = jax.random.randint(key, (2,), 0, 2 * pad + 1, dtype=jnp.int32)
    # Centre the shift so the kernel works directly in unpadded coordinates.
    delta = shift.astype(jnp.int32) - jnp.int32(pad)            # in [-pad, pad]

    cb = _channel_block(c, h, w, x.dtype.itemsize)
    grid = (c // cb,)

    grid_spec = pltpu.PrefetchScalarGridSpec(
        num_scalar_prefetch=1,
        grid=grid,
        in_specs=[pl.BlockSpec((cb, h, w), lambda ci, shift_ref: (ci, 0, 0))],
        out_specs=pl.BlockSpec((cb, h, w), lambda ci, shift_ref: (ci, 0, 0)),
    )

    nbytes = x.size * x.dtype.itemsize
    cost = pl.CostEstimate(
        flops=2 * c * h * w * (h + w),     # two one-hot selection matmuls
        transcendentals=0,
        bytes_accessed=2 * nbytes,         # mem-bound: read image, write image
    )

    return pl.pallas_call(
        _random_shift_kernel,
        out_shape=jax.ShapeDtypeStruct((c, h, w), x.dtype),
        grid_spec=grid_spec,
        compiler_params=pltpu.CompilerParams(
            dimension_semantics=("parallel",),
        ),
        cost_estimate=cost,
    )(delta, x)


def _reference(x, pad, shift):
    """Pure-JAX reference: integer shift with replicate (edge) padding."""
    xp = jnp.pad(x, ((0, 0), (pad, pad), (pad, pad)), mode="edge")
    sy, sx = int(shift[0]), int(shift[1])
    h, w = x.shape[1], x.shape[2]
    return xp[:, sy:sy + h, sx:sx + w]


if __name__ == "__main__":
    key = jax.random.PRNGKey(0)
    k_img, k_shift = jax.random.split(key)

    pad = 4
    x = jax.random.normal(k_img, (4, 16, 16), dtype=jnp.float32)

    # Deterministic shift -> correctness check against the reference.
    shift = jax.random.randint(k_shift, (2,), 0, 2 * pad + 1, dtype=jnp.int32)
    y = jax.block_until_ready(random_shifts_aug(x, pad, shift=shift))
    assert y.shape == x.shape and y.dtype == x.dtype
    ref = _reference(x, pad, shift)
    assert jnp.allclose(y, ref, atol=1e-5, rtol=1e-5), float(
        jnp.max(jnp.abs(y - ref)))

    # Corner shifts exercise the replicate-padding (clamp) paths.
    for s in ((0, 0), (2 * pad, 2 * pad), (0, 2 * pad), (2 * pad, 0)):
        s = jnp.asarray(s, dtype=jnp.int32)
        y_s = jax.block_until_ready(random_shifts_aug(x, pad, shift=s))
        assert jnp.allclose(y_s, _reference(x, pad, s), atol=1e-5, rtol=1e-5), s

    # bf16 path (native MXU inputs on v6e/v7x); one-hot selection keeps it exact.
    xb = x.astype(jnp.bfloat16)
    yb = jax.block_until_ready(random_shifts_aug(xb, pad, shift=shift))
    assert yb.dtype == jnp.bfloat16
    assert jnp.array_equal(yb, _reference(xb, pad, shift))

    # The "real" entry point: shift sampled on-device from a PRNG key.
    y_rand = jax.block_until_ready(random_shifts_aug(x, pad, key=k_shift))
    assert y_rand.shape == x.shape and bool(jnp.all(jnp.isfinite(y_rand)))

    print("KERNEL_OK")
</pallas_src>

<mosaic_0001>
module attributes {stable_mosaic.version = 11 : i64} {
  func.func @_random_shift_kernel(%arg0: i32, %arg1: memref<2xi32, #tpu.memory_space<smem>>, %arg2: memref<4x16x16xf32, #tpu.memory_space<vmem>>, %arg3: memref<4x16x16xf32, #tpu.memory_space<vmem>>) attributes {dimension_semantics = [#tpu.dimension_semantics<parallel>], iteration_bounds = array<i64: 1>, scalar_prefetch = 1 : i64, scratch_operands = 0 : i64, tpu.core_type = #tpu.core_type<tc>, window_params = [{transform_indices = @transform_0, window_bounds = array<i64: 4, 16, 16>}, {transform_indices = @transform_1, window_bounds = array<i64: 4, 16, 16>}]} {
    %c0 = arith.constant 0 : index
    %0 = memref.load %arg1[%c0] : memref<2xi32, #tpu.memory_space<smem>>
    %c1 = arith.constant 1 : index
    %1 = memref.load %arg1[%c1] : memref<2xi32, #tpu.memory_space<smem>>
    %2 = tpu.iota {dimensions = array<i32: 0>} : vector<16x16xi32>
    %3 = tpu.iota {dimensions = array<i32: 1>} : vector<16x16xi32>
    %4 = vector.broadcast %0 : i32 to vector<16x16xi32>
    %5 = arith.addi %2, %4 : vector<16x16xi32>
    %c0_i32 = arith.constant 0 : i32
    %c15_i32 = arith.constant 15 : i32
    %6 = vector.broadcast %c0_i32 : i32 to vector<16x16xi32>
    %7 = arith.maxsi %6, %5 : vector<16x16xi32>
    %8 = vector.broadcast %c15_i32 : i32 to vector<16x16xi32>
    %9 = arith.minsi %8, %7 : vector<16x16xi32>
    %10 = arith.cmpi eq, %3, %9 : vector<16x16xi32>
    %11 = arith.extui %10 : vector<16x16xi1> to vector<16x16xi32>
    %12 = arith.sitofp %11 : vector<16x16xi32> to vector<16x16xf32>
    %13 = tpu.iota {dimensions = array<i32: 0>} : vector<16x16xi32>
    %14 = tpu.iota {dimensions = array<i32: 1>} : vector<16x16xi32>
    %15 = vector.broadcast %1 : i32 to vector<16x16xi32>
    %16 = arith.addi %14, %15 : vector<16x16xi32>
    %c0_i32_0 = arith.constant 0 : i32
    %c15_i32_1 = arith.constant 15 : i32
    %17 = vector.broadcast %c0_i32_0 : i32 to vector<16x16xi32>
    %18 = arith.maxsi %17, %16 : vector<16x16xi32>
    %19 = vector.broadcast %c15_i32_1 : i32 to vector<16x16xi32>
    %20 = arith.minsi %19, %18 : vector<16x16xi32>
    %21 = arith.cmpi eq, %13, %20 : vector<16x16xi32>
    %22 = arith.extui %21 : vector<16x16xi1> to vector<16x16xi32>
    %23 = arith.sitofp %22 : vector<16x16xi32> to vector<16x16xf32>
    %c0_2 = arith.constant 0 : index
    %c0_3 = arith.constant 0 : index
    %c0_4 = arith.constant 0 : index
    %24 = vector.load %arg2[%c0_2, %c0_3, %c0_4] : memref<4x16x16xf32, #tpu.memory_space<vmem>>, vector<4x16x16xf32>
    %25 = vector.shape_cast %24 : vector<4x16x16xf32> to vector<64x16xf32>
    %cst = arith.constant dense<0.000000e+00> : vector<64x16xf32>
    %26 = tpu.matmul %25, %23, %cst {dimension_numbers = #tpu.dot_dimension_numbers<[1], [0], [0], [1], [0, 0, 1, 1], [], []>} : vector<64x16xf32>, vector<16x16xf32>, vector<64x16xf32> -> vector<64x16xf32>
    %27 = vector.shape_cast %26 : vector<64x16xf32> to vector<4x16x16xf32>
    %28 = vector.shape_cast %12 : vector<16x16xf32> to vector<1x16x16xf32>
    %29 = vector.broadcast %28 : vector<1x16x16xf32> to vector<4x16x16xf32>
    "tpu.trace_start"() <{level = 10 : i32, message = "chk,ckw->chw"}> : () -> ()
    %cst_5 = arith.constant dense<0.000000e+00> : vector<4x16x16xf32>
    %30 = tpu.matmul %29, %27, %cst_5 {dimension_numbers = #tpu.dot_dimension_numbers<[2], [1], [1], [2], [0, 0, 0, 1, 1, 2], [0], [0]>} : vector<4x16x16xf32>, vector<4x16x16xf32>, vector<4x16x16xf32> -> vector<4x16x16xf32>
    "tpu.trace_stop"() : () -> ()
    %c0_6 = arith.constant 0 : index
    %c0_7 = arith.constant 0 : index
    %c0_8 = arith.constant 0 : index
    %31 = vector.load %arg3[%c0_6, %c0_7, %c0_8] : memref<4x16x16xf32, #tpu.memory_space<vmem>>, vector<4x16x16xf32>
    tpu.vector_store %arg3[%c0_6, %c0_7, %c0_8], %30 {strides = array<i32>} : memref<4x16x16xf32, #tpu.memory_space<vmem>>, vector<4x16x16xf32>,
    return
  }
  func.func @transform_0(%arg0: i32, %arg1: memref<2xi32, #tpu.memory_space<smem>>) -> (i32, i32, i32) {
    %c0_i32 = arith.constant 0 : i32
    %c0_i32_0 = arith.constant 0 : i32
    %c0_i32_1 = arith.constant 0 : i32
    return %arg0, %c0_i32, %c0_i32_0 : i32, i32, i32
  }
  func.func @transform_1(%arg0: i32, %arg1: memref<2xi32, #tpu.memory_space<smem>>) -> (i32, i32, i32) {
    %c0_i32 = arith.constant 0 : i32
    %c0_i32_0 = arith.constant 0 : i32
    %c0_i32_1 = arith.constant 0 : i32
    return %arg0, %c0_i32, %c0_i32_0 : i32, i32, i32
  }
}

</mosaic_0001>

<llo_original>
// kernel: tpu_custom_call.1
$region0: #{tpu_custom_call.1}
  #allocation0 [shape = 'u32[]', space=smem, size = 0x4, offset = 0x4, fixed_abs, tag = 'smem constant byte address 0x4 - core index']
  #allocation1 [shape = 'u32[144,128]{1,0:T(1,128)}', space=vmem, size = 0x12000, scoped, tag = 'internal scratch']
  #allocation2 [shape = 's32[1]{0}', space=sflag, size = 0x4, scoped, tag = 'scoped memory for tpu_custom_call.1']
  #allocation3 [shape = 'u8[512]{0}', space=smem, size = 0x200, scoped, tag = 'prefetched SMEM operand 0']
  %s0 = inlined_call_operand.hbm [shape: s32[2], index: 0, kind: input, shape index: {}]
  %s1 = inlined_call_operand.hbm [shape: f32[4,16,16], index: 1, kind: input, shape index: {}]
  %s2 = inlined_call_operand.hbm [shape: f32[4,16,16], index: 2, kind: output, shape index: {}]
  %s3 = sld [smem:[#allocation0]]
  $region18: #{tpu_custom_call.1} parent=0
    _
  %s5 = ssub.s32 1, %s3
  %s6 = scalar_select 0, %s5, %s3
  %8 = dma.hbm_to_smem %s0, 16, [#allocation3], [#allocation2]
  %9 = dma.done [#allocation2], 16
  %10 = sfence
  $region1: #{tpu_custom_call.1} parent=0
    #allocation4 [shape = 'u8[32768]{0}', space=vmem, size = 0x8000, scoped, tag = 'input window, operand 1, single buffered']
    #allocation5 [shape = 's32[1]{0}', space=sflag, size = 0x4, scoped, tag = 'scoped memory for tpu_custom_call.1']
    #allocation6 [shape = 's32[1]{0}', space=sflag, size = 0x4, scoped, tag = 'scoped memory for tpu_custom_call.1']
    #allocation7 [shape = 'u8[32768]{0}', space=vmem, size = 0x8000, scoped, tag = 'output window, operand 0, single buffered']
    %11 = vsyncpa [#allocation5], 0
    %12 = vsyncpa [#allocation6], 0
    // Predicated region
    $region2: #{tpu_custom_call.1} parent=1 // pred_check
      _
    $region3: #{tpu_custom_call.1} parent=1 // pred_check_branch
      %14 = sbr.rel (0) target = $region5
    $region4: #{tpu_custom_call.1} parent=1 // pred_region
      %s16 = ssub.s32 1024, 1024
      %17 = vsyncadd [#allocation5], %s16
      %s18 = sshll.u32 [#allocation4], 4
      %s19 = int_to_ptr.vmem [resolvable:$true] %s18
      %24 = dma.hbm_to_vmem [thread:$0]  %s1, 1024, %s19, [#allocation5], 128, 128, 8
    $region5: #{tpu_custom_call.1} parent=1 // pred_fallthru
      _
    // Predicated region
    $region6: #{tpu_custom_call.1} parent=1 // pred_check
      _
    $region7: #{tpu_custom_call.1} parent=1 // pred_check_branch
      %26 = sbr.rel (0) target = $region9
    $region8: #{tpu_custom_call.1} parent=1 // pred_region
      %27 = dma.done [#allocation5], 1024
    $region9: #{tpu_custom_call.1} parent=1 // pred_fallthru
      _
    %s28 = sld [smem:[#allocation3]]
    %s29 = sld [smem:[#allocation3 + $0x1]]
    %v30 = vlaneseq
    %v31 = vshrl.u32 %v30, 7
    %v32 = vadd.s32 %v31, 8
    %v33 = vlaneseq
    %v34 = vand.u32 %v33, 127
    %v35 = vstv %s28
    %v36 = vadd.s32 %v31, %v35
    %v37 = vadd.s32 %v32, %v35
    %vm38 = vcmp.gt.s32.totalorder %v36, 0
    %v39 = vsel %vm38, %v36, 0
    %vm40 = vcmp.gt.s32.totalorder %v37, 0
    %v41 = vsel %vm40, %v37, 0
    %vm42 = vcmp.lt.s32.totalorder %v39, 15
    %v43 = vsel %vm42, %v39, 15
    %vm44 = vcmp.lt.s32.totalorder %v41, 15
    %v45 = vsel %vm44, %v41, 15
    %vm46 = vcmp.eq.s32.totalorder %v34, %v43
    %vm47 = vcmp.eq.s32.totalorder %v34, %v45
    %v48 = vsel %vm46, 1, 0
    %v49 = vsel %vm47, 1, 0
    %v50 = vcvt.s32.f32 %v48
    %v51 = vcvt.s32.f32 %v49
    %v52 = vstv %s29
    %v53 = vadd.s32 %v34, %v52
    %vm54 = vcmp.gt.s32.totalorder %v53, 0
    %v55 = vsel %vm54, %v53, 0
    %vm56 = vcmp.lt.s32.totalorder %v55, 15
    %v57 = vsel %vm56, %v55, 15
    %vm58 = vcmp.eq.s32.totalorder %v31, %v57
    %vm59 = vcmp.eq.s32.totalorder %v32, %v57
    %v60 = vsel %vm58, 1, 0
    %v61 = vsel %vm59, 1, 0
    %v62 = vcvt.s32.f32 %v60
    %v63 = vcvt.s32.f32 %v61
    %v64 = vld [vmem:[#allocation4] sm:$0xff]
    %v65 = vld [vmem:[#allocation4 + $0x8] sm:$0xff]
    %v66 = vld [vmem:[#allocation4 + $0x10] sm:$0xff]
    %v67 = vld [vmem:[#allocation4 + $0x18] sm:$0xff]
    %v68 = vld [vmem:[#allocation4 + $0x20] sm:$0xff]
    %v69 = vld [vmem:[#allocation4 + $0x28] sm:$0xff]
    %v70 = vld [vmem:[#allocation4 + $0x30] sm:$0xff]
    %v71 = vld [vmem:[#allocation4 + $0x38] sm:$0xff]
    %vm72 = vcmask 130048
    %v74 = vsel %vm72, %v64, 0
    %v77 = vsel %vm72, %v65, 0
    %v80 = vsel %vm72, %v66, 0
    %v83 = vsel %vm72, %v67, 0
    %v86 = vsel %vm72, %v68, 0
    %v89 = vsel %vm72, %v69, 0
    %v92 = vsel %vm72, %v70, 0
    %v95 = vsel %vm72, %v71, 0
    %97 = vmatprep.subr.mxu0 0.0
    %98 = vmatpush1.msra.mxu0 0.0
    %99 = vmatprep.subr.mxu0 0.0
    %100 = vmatpush1.msra.mxu0 0.0
    %101 = vmatprep.subr.mxu0 0.0
    %102 = vmatpush1.msra.mxu0 0.0
    %103 = vmatprep.subr.mxu0 0.0
    %104 = vmatpush1.msra.mxu0 0.0
    %105 = vmatprep.subr.mxu0 0.0
    %106 = vmatpush1.msra.mxu0 0.0
    %107 = vmatprep.subr.mxu0 0.0
    %108 = vmatpush1.msra.mxu0 0.0
    %109 = vmatprep.subr.mxu0 0.0
    %110 = vmatpush1.msra.mxu0 0.0
    %111 = vmatprep.subr.mxu0 0.0
    %112 = vmatpush1.msra.mxu0 0.0
    %113 = vmatprep.subr.mxu0 0.0
    %114 = vmatpush1.msra.mxu0 0.0
    %115 = vmatprep.subr.mxu0 0.0
    %116 = vmatpush1.msra.mxu0 0.0
    %117 = vmatprep.subr.mxu0 0.0
    %118 = vmatpush1.msra.mxu0 0.0
    %119 = vmatprep.subr.mxu0 0.0
    %120 = vmatpush1.msra.mxu0 0.0
    %121 = vmatprep.subr.mxu0 0.0
    %122 = vmatpush1.msra.mxu0 0.0
    %123 = vmatprep.subr.mxu0 0.0
    %124 = vmatpush1.msra.mxu0 0.0
    %125 = vmatprep.subr.mxu0 0.0
    %126 = vmatpush1.msra.mxu0 %v63
    %127 = vmatprep.subr.mxu0 0.0
    %128 = vmatpush1.msra.mxu0 %v62
    %129 = vmatprep.subr.mxu0 0.0
    %130 = vmatpush2.msra.mxu0 0.0
    %131 = vmatprep.subr.mxu0 0.0
    %132 = vmatpush2.msra.mxu0 0.0
    %133 = vmatprep.subr.mxu0 0.0
    %134 = vmatpush2.msra.mxu0 0.0
    %135 = vmatprep.subr.mxu0 0.0
    %136 = vmatpush2.msra.mxu0 0.0
    %137 = vmatprep.subr.mxu0 0.0
    %138 = vmatpush2.msra.mxu0 0.0
    %139 = vmatprep.subr.mxu0 0.0
    %140 = vmatpush2.msra.mxu0 0.0
    %141 = vmatprep.subr.mxu0 0.0
    %142 = vmatpush2.msra.mxu0 0.0
    %143 = vmatprep.subr.mxu0 0.0
    %144 = vmatpush2.msra.mxu0 0.0
    %145 = vmatprep.subr.mxu0 0.0
    %146 = vmatpush2.msra.mxu0 0.0
    %147 = vmatprep.subr.mxu0 0.0
    %148 = vmatpush2.msra.mxu0 0.0
    %149 = vmatprep.subr.mxu0 0.0
    %150 = vmatpush2.msra.mxu0 0.0
    %151 = vmatprep.subr.mxu0 0.0
    %152 = vmatpush2.msra.mxu0 0.0
    %153 = vmatprep.subr.mxu0 0.0
    %154 = vmatpush2.msra.mxu0 0.0
    %155 = vmatprep.subr.mxu0 0.0
    %156 = vmatpush2.msra.mxu0 0.0
    %157 = vmatprep.subr.mxu0 0.0
    %158 = vmatpush2.msra.mxu0 0.0
    %159 = vmatprep.subr.mxu0 0.0
    %160 = vmatpush2.msra.mxu0 0.0
    %161 = vmatprep.mubr.f32.mxu0 0.0
    %162 = vmatmul.mubr.f32.gmra.mxu0 %v74
    %v163 = vpop.f32.mrf.mxu0
    %v164 = vadd.f32 0.0, %v163
    %v165 = vpop.f32.mrf.mxu0
    %166 = vmatprep.mubr.f32.mxu0 0.0
    %167 = vmatmul.mubr.f32.gmra.mxu0 %v77
    %v168 = vpop.f32.mrf.mxu0
    %v169 = vadd.f32 0.0, %v168
    %v170 = vpop.f32.mrf.mxu0
    %171 = vmatprep.mubr.f32.mxu0 0.0
    %172 = vmatmul.mubr.f32.gmra.mxu0 %v80
    %v173 = vpop.f32.mrf.mxu0
    %v174 = vadd.f32 0.0, %v173
    %v175 = vpop.f32.mrf.mxu0
    %176 = vmatprep.mubr.f32.mxu0 0.0
    %177 = vmatmul.mubr.f32.gmra.mxu0 %v83
    %v178 = vpop.f32.mrf.mxu0
    %v179 = vadd.f32 0.0, %v178
    %v180 = vpop.f32.mrf.mxu0
    %181 = vmatprep.mubr.f32.mxu0 0.0
    %182 = vmatmul.mubr.f32.gmra.mxu0 %v86
    %v183 = vpop.f32.mrf.mxu0
    %v184 = vadd.f32 0.0, %v183
    %v185 = vpop.f32.mrf.mxu0
    %186 = vmatprep.mubr.f32.mxu0 0.0
    %187 = vmatmul.mubr.f32.gmra.mxu0 %v89
    %v188 = vpop.f32.mrf.mxu0
    %v189 = vadd.f32 0.0, %v188
    %v190 = vpop.f32.mrf.mxu0
    %191 = vmatprep.mubr.f32.mxu0 0.0
    %192 = vmatmul.mubr.f32.gmra.mxu0 %v92
    %v193 = vpop.f32.mrf.mxu0
    %v194 = vadd.f32 0.0, %v193
    %v195 = vpop.f32.mrf.mxu0
    %196 = vmatprep.mubr.f32.mxu0 0.0
    %197 = vmatmul.mubr.f32.gmra.mxu0 %v95
    %v198 = vpop.f32.mrf.mxu0
    %v199 = vadd.f32 0.0, %v198
    %v200 = vpop.f32.mrf.mxu0
    %201 = vdwg.mxu0
    %v203 = vsel %vm72, %v50, 0
    %v206 = vsel %vm72, %v51, 0
    %208 = vmatprep.subr.mxu0 0.0
    %209 = vmatpush1.msra.mxu0 0.0
    %210 = vmatprep.subr.mxu0 0.0
    %211 = vmatpush1.msra.mxu0 0.0
    %212 = vmatprep.subr.mxu0 0.0
    %213 = vmatpush1.msra.mxu0 0.0
    %214 = vmatprep.subr.mxu0 0.0
    %215 = vmatpush1.msra.mxu0 0.0
    %216 = vmatprep.subr.mxu0 0.0
    %217 = vmatpush1.msra.mxu0 0.0
    %218 = vmatprep.subr.mxu0 0.0
    %219 = vmatpush1.msra.mxu0 0.0
    %220 = vmatprep.subr.mxu0 0.0
    %221 = vmatpush1.msra.mxu0 0.0
    %222 = vmatprep.subr.mxu0 0.0
    %223 = vmatpush1.msra.mxu0 0.0
    %224 = vmatprep.subr.mxu0 0.0
    %225 = vmatpush1.msra.mxu0 0.0
    %226 = vmatprep.subr.mxu0 0.0
    %227 = vmatpush1.msra.mxu0 0.0
    %228 = vmatprep.subr.mxu0 0.0
    %229 = vmatpush1.msra.mxu0 0.0
    %230 = vmatprep.subr.mxu0 0.0
    %231 = vmatpush1.msra.mxu0 0.0
    %232 = vmatprep.subr.mxu0 0.0
    %233 = vmatpush1.msra.mxu0 0.0
    %234 = vmatprep.subr.mxu0 0.0
    %235 = vmatpush1.msra.mxu0 0.0
    %236 = vmatprep.subr.mxu0 0.0
    %237 = vmatpush1.msra.mxu0 %v169
    %238 = vmatprep.subr.mxu0 0.0
    %239 = vmatpush1.msra.mxu0 %v164
    %240 = vmatprep.subr.mxu0 0.0
    %241 = vmatpush2.msra.mxu0 0.0
    %242 = vmatprep.subr.mxu0 0.0
    %243 = vmatpush2.msra.mxu0 0.0
    %244 = vmatprep.subr.mxu0 0.0
    %245 = vmatpush2.msra.mxu0 0.0
    %246 = vmatprep.subr.mxu0 0.0
    %247 = vmatpush2.msra.mxu0 0.0
    %248 = vmatprep.subr.mxu0 0.0
    %249 = vmatpush2.msra.mxu0 0.0
    %250 = vmatprep.subr.mxu0 0.0
    %251 = vmatpush2.msra.mxu0 0.0
    %252 = vmatprep.subr.mxu0 0.0
    %253 = vmatpush2.msra.mxu0 0.0
    %254 = vmatprep.subr.mxu0 0.0
    %255 = vmatpush2.msra.mxu0 0.0
    %256 = vmatprep.subr.mxu0 0.0
    %257 = vmatpush2.msra.mxu0 0.0
    %258 = vmatprep.subr.mxu0 0.0
    %259 = vmatpush2.msra.mxu0 0.0
    %260 = vmatprep.subr.mxu0 0.0
    %261 = vmatpush2.msra.mxu0 0.0
    %262 = vmatprep.subr.mxu0 0.0
    %263 = vmatpush2.msra.mxu0 0.0
    %264 = vmatprep.subr.mxu0 0.0
    %265 = vmatpush2.msra.mxu0 0.0
    %266 = vmatprep.subr.mxu0 0.0
    %267 = vmatpush2.msra.mxu0 0.0
    %268 = vmatprep.subr.mxu0 0.0
    %269 = vmatpush2.msra.mxu0 0.0
    %270 = vmatprep.subr.mxu0 0.0
    %271 = vmatpush2.msra.mxu0 0.0
    %272 = vmatprep.mubr.f32.mxu0 0.0
    %273 = vmatmul.mubr.f32.gmra.mxu0 %v203
    %v274 = vpop.f32.mrf.mxu0
    %v275 = vadd.f32 0.0, %v274
    %v276 = vpop.f32.mrf.mxu0
    %277 = vmatprep.mubr.f32.mxu0 0.0
    %278 = vmatmul.mubr.f32.gmra.mxu0 %v206
    %v279 = vpop.f32.mrf.mxu0
    %v280 = vadd.f32 0.0, %v279
    %v281 = vpop.f32.mrf.mxu0
    %282 = vdwg.mxu0
    %283 = vmatprep.subr.mxu0 0.0
    %284 = vmatpush1.msra.mxu0 0.0
    %285 = vmatprep.subr.mxu0 0.0
    %286 = vmatpush1.msra.mxu0 0.0
    %287 = vmatprep.subr.mxu0 0.0
    %288 = vmatpush1.msra.mxu0 0.0
    %289 = vmatprep.subr.mxu0 0.0
    %290 = vmatpush1.msra.mxu0 0.0
    %291 = vmatprep.subr.mxu0 0.0
    %292 = vmatpush1.msra.mxu0 0.0
    %293 = vmatprep.subr.mxu0 0.0
    %294 = vmatpush1.msra.mxu0 0.0
    %295 = vmatprep.subr.mxu0 0.0
    %296 = vmatpush1.msra.mxu0 0.0
    %297 = vmatprep.subr.mxu0 0.0
    %298 = vmatpush1.msra.mxu0 0.0
    %299 = vmatprep.subr.mxu0 0.0
    %300 = vmatpush1.msra.mxu0 0.0
    %301 = vmatprep.subr.mxu0 0.0
    %302 = vmatpush1.msra.mxu0 0.0
    %303 = vmatprep.subr.mxu0 0.0
    %304 = vmatpush1.msra.mxu0 0.0
    %305 = vmatprep.subr.mxu0 0.0
    %306 = vmatpush1.msra.mxu0 0.0
    %307 = vmatprep.subr.mxu0 0.0
    %308 = vmatpush1.msra.mxu0 0.0
    %309 = vmatprep.subr.mxu0 0.0
    %310 = vmatpush1.msra.mxu0 0.0
    %311 = vmatprep.subr.mxu0 0.0
    %312 = vmatpush1.msra.mxu0 %v179
    %313 = vmatprep.subr.mxu0 0.0
    %314 = vmatpush1.msra.mxu0 %v174
    %315 = vmatprep.subr.mxu0 0.0
    %316 = vmatpush2.msra.mxu0 0.0
    %317 = vmatprep.subr.mxu0 0.0
    %318 = vmatpush2.msra.mxu0 0.0
    %319 = vmatprep.subr.mxu0 0.0
    %320 = vmatpush2.msra.mxu0 0.0
    %321 = vmatprep.subr.mxu0 0.0
    %322 = vmatpush2.msra.mxu0 0.0
    %323 = vmatprep.subr.mxu0 0.0
    %324 = vmatpush2.msra.mxu0 0.0
    %325 = vmatprep.subr.mxu0 0.0
    %326 = vmatpush2.msra.mxu0 0.0
    %327 = vmatprep.subr.mxu0 0.0
    %328 = vmatpush2.msra.mxu0 0.0
    %329 = vmatprep.subr.mxu0 0.0
    %330 = vmatpush2.msra.mxu0 0.0
    %331 = vmatprep.subr.mxu0 0.0
    %332 = vmatpush2.msra.mxu0 0.0
    %333 = vmatprep.subr.mxu0 0.0
    %334 = vmatpush2.msra.mxu0 0.0
    %335 = vmatprep.subr.mxu0 0.0
    %336 = vmatpush2.msra.mxu0 0.0
    %337 = vmatprep.subr.mxu0 0.0
    %338 = vmatpush2.msra.mxu0 0.0
    %339 = vmatprep.subr.mxu0 0.0
    %340 = vmatpush2.msra.mxu0 0.0
    %341 = vmatprep.subr.mxu0 0.0
    %342 = vmatpush2.msra.mxu0 0.0
    %343 = vmatprep.subr.mxu0 0.0
    %344 = vmatpush2.msra.mxu0 0.0
    %345 = vmatprep.subr.mxu0 0.0
    %346 = vmatpush2.msra.mxu0 0.0
    %347 = vmatprep.mubr.f32.mxu0 0.0
    %348 = vmatmul.mubr.f32.gmra.mxu0 %v203
    %v349 = vpop.f32.mrf.mxu0
    %v350 = vadd.f32 0.0, %v349
    %v351 = vpop.f32.mrf.mxu0
    %352 = vmatprep.mubr.f32.mxu0 0.0
    %353 = vmatmul.mubr.f32.gmra.mxu0 %v206
    %v354 = vpop.f32.mrf.mxu0
    %v355 = vadd.f32 0.0, %v354
    %v356 = vpop.f32.mrf.mxu0
    %357 = vdwg.mxu0
    %358 = vmatprep.subr.mxu0 0.0
    %359 = vmatpush1.msra.mxu0 0.0
    %360 = vmatprep.subr.mxu0 0.0
    %361 = vmatpush1.msra.mxu0 0.0
    %362 = vmatprep.subr.mxu0 0.0
    %363 = vmatpush1.msra.mxu0 0.0
    %364 = vmatprep.subr.mxu0 0.0
    %365 = vmatpush1.msra.mxu0 0.0
    %366 = vmatprep.subr.mxu0 0.0
    %367 = vmatpush1.msra.mxu0 0.0
    %368 = vmatprep.subr.mxu0 0.0
    %369 = vmatpush1.msra.mxu0 0.0
    %370 = vmatprep.subr.mxu0 0.0
    %371 = vmatpush1.msra.mxu0 0.0
    %372 = vmatprep.subr.mxu0 0.0
    %373 = vmatpush1.msra.mxu0 0.0
    %374 = vmatprep.subr.mxu0 0.0
    %375 = vmatpush1.msra.mxu0 0.0
    %376 = vmatprep.subr.mxu0 0.0
    %377 = vmatpush1.msra.mxu0 0.0
    %378 = vmatprep.subr.mxu0 0.0
    %379 = vmatpush1.msra.mxu0 0.0
    %380 = vmatprep.subr.mxu0 0.0
    %381 = vmatpush1.msra.mxu0 0.0
    %382 = vmatprep.subr.mxu0 0.0
    %383 = vmatpush1.msra.mxu0 0.0
    %384 = vmatprep.subr.mxu0 0.0
    %385 = vmatpush1.msra.mxu0 0.0
    %386 = vmatprep.subr.mxu0 0.0
    %387 = vmatpush1.msra.mxu0 %v189
    %388 = vmatprep.subr.mxu0 0.0
    %389 = vmatpush1.msra.mxu0 %v184
    %390 = vmatprep.subr.mxu0 0.0
    %391 = vmatpush2.msra.mxu0 0.0
    %392 = vmatprep.subr.mxu0 0.0
    %393 = vmatpush2.msra.mxu0 0.0
    %394 = vmatprep.subr.mxu0 0.0
    %395 = vmatpush2.msra.mxu0 0.0
    %396 = vmatprep.subr.mxu0 0.0
    %397 = vmatpush2.msra.mxu0 0.0
    %398 = vmatprep.subr.mxu0 0.0
    %399 = vmatpush2.msra.mxu0 0.0
    %400 = vmatprep.subr.mxu0 0.0
    %401 = vmatpush2.msra.mxu0 0.0
    %402 = vmatprep.subr.mxu0 0.0
    %403 = vmatpush2.msra.mxu0 0.0
    %404 = vmatprep.subr.mxu0 0.0
    %405 = vmatpush2.msra.mxu0 0.0
    %406 = vmatprep.subr.mxu0 0.0
    %407 = vmatpush2.msra.mxu0 0.0
    %408 = vmatprep.subr.mxu0 0.0
    %409 = vmatpush2.msra.mxu0 0.0
    %410 = vmatprep.subr.mxu0 0.0
    %411 = vmatpush2.msra.mxu0 0.0
    %412 = vmatprep.subr.mxu0 0.0
    %413 = vmatpush2.msra.mxu0 0.0
    %414 = vmatprep.subr.mxu0 0.0
    %415 = vmatpush2.msra.mxu0 0.0
    %416 = vmatprep.subr.mxu0 0.0
    %417 = vmatpush2.msra.mxu0 0.0
    %418 = vmatprep.subr.mxu0 0.0
    %419 = vmatpush2.msra.mxu0 0.0
    %420 = vmatprep.subr.mxu0 0.0
    %421 = vmatpush2.msra.mxu0 0.0
    %422 = vmatprep.mubr.f32.mxu0 0.0
    %423 = vmatmul.mubr.f32.gmra.mxu0 %v203
    %v424 = vpop.f32.mrf.mxu0
    %v425 = vadd.f32 0.0, %v424
    %v426 = vpop.f32.mrf.mxu0
    %427 = vmatprep.mubr.f32.mxu0 0.0
    %428 = vmatmul.mubr.f32.gmra.mxu0 %v206
    %v429 = vpop.f32.mrf.mxu0
    %v430 = vadd.f32 0.0, %v429
    %v431 = vpop.f32.mrf.mxu0
    %432 = vdwg.mxu0
    %433 = vmatprep.subr.mxu0 0.0
    %434 = vmatpush1.msra.mxu0 0.0
    %435 = vmatprep.subr.mxu0 0.0
    %436 = vmatpush1.msra.mxu0 0.0
    %437 = vmatprep.subr.mxu0 0.0
    %438 = vmatpush1.msra.mxu0 0.0
    %439 = vmatprep.subr.mxu0 0.0
    %440 = vmatpush1.msra.mxu0 0.0
    %441 = vmatprep.subr.mxu0 0.0
    %442 = vmatpush1.msra.mxu0 0.0
    %443 = vmatprep.subr.mxu0 0.0
    %444 = vmatpush1.msra.mxu0 0.0
    %445 = vmatprep.subr.mxu0 0.0
    %446 = vmatpush1.msra.mxu0 0.0
    %447 = vmatprep.subr.mxu0 0.0
    %448 = vmatpush1.msra.mxu0 0.0
    %449 = vmatprep.subr.mxu0 0.0
    %450 = vmatpush1.msra.mxu0 0.0
    %451 = vmatprep.subr.mxu0 0.0
    %452 = vmatpush1.msra.mxu0 0.0
    %453 = vmatprep.subr.mxu0 0.0
    %454 = vmatpush1.msra.mxu0 0.0
    %455 = vmatprep.subr.mxu0 0.0
    %456 = vmatpush1.msra.mxu0 0.0
    %457 = vmatprep.subr.mxu0 0.0
    %458 = vmatpush1.msra.mxu0 0.0
    %459 = vmatprep.subr.mxu0 0.0
    %460 = vmatpush1.msra.mxu0 0.0
    %461 = vmatprep.subr.mxu0 0.0
    %462 = vmatpush1.msra.mxu0 %v199
    %463 = vmatprep.subr.mxu0 0.0
    %464 = vmatpush1.msra.mxu0 %v194
    %465 = vmatprep.subr.mxu0 0.0
    %466 = vmatpush2.msra.mxu0 0.0
    %467 = vmatprep.subr.mxu0 0.0
    %468 = vmatpush2.msra.mxu0 0.0
    %469 = vmatprep.subr.mxu0 0.0
    %470 = vmatpush2.msra.mxu0 0.0
    %471 = vmatprep.subr.mxu0 0.0
    %472 = vmatpush2.msra.mxu0 0.0
    %473 = vmatprep.subr.mxu0 0.0
    %474 = vmatpush2.msra.mxu0 0.0
    %475 = vmatprep.subr.mxu0 0.0
    %476 = vmatpush2.msra.mxu0 0.0
    %477 = vmatprep.subr.mxu0 0.0
    %478 = vmatpush2.msra.mxu0 0.0
    %479 = vmatprep.subr.mxu0 0.0
    %480 = vmatpush2.msra.mxu0 0.0
    %481 = vmatprep.subr.mxu0 0.0
    %482 = vmatpush2.msra.mxu0 0.0
    %483 = vmatprep.subr.mxu0 0.0
    %484 = vmatpush2.msra.mxu0 0.0
    %485 = vmatprep.subr.mxu0 0.0
    %486 = vmatpush2.msra.mxu0 0.0
    %487 = vmatprep.subr.mxu0 0.0
    %488 = vmatpush2.msra.mxu0 0.0
    %489 = vmatprep.subr.mxu0 0.0
    %490 = vmatpush2.msra.mxu0 0.0
    %491 = vmatprep.subr.mxu0 0.0
    %492 = vmatpush2.msra.mxu0 0.0
    %493 = vmatprep.subr.mxu0 0.0
    %494 = vmatpush2.msra.mxu0 0.0
    %495 = vmatprep.subr.mxu0 0.0
    %496 = vmatpush2.msra.mxu0 0.0
    %497 = vmatprep.mubr.f32.mxu0 0.0
    %498 = vmatmul.mubr.f32.gmra.mxu0 %v203
    %v499 = vpop.f32.mrf.mxu0
    %v500 = vadd.f32 0.0, %v499
    %v501 = vpop.f32.mrf.mxu0
    %502 = vmatprep.mubr.f32.mxu0 0.0
    %503 = vmatmul.mubr.f32.gmra.mxu0 %v206
    %v504 = vpop.f32.mrf.mxu0
    %v505 = vadd.f32 0.0, %v504
    %v506 = vpop.f32.mrf.mxu0
    %507 = vdwg.mxu0
    %508 = vst.msk [vmem:[#allocation7] sm:$0xff] %vm72, %v275
    %509 = vst.msk [vmem:[#allocation7 + $0x8] sm:$0xff] %vm72, %v280
    %510 = vst.msk [vmem:[#allocation7 + $0x10] sm:$0xff] %vm72, %v350
    %511 = vst.msk [vmem:[#allocation7 + $0x18] sm:$0xff] %vm72, %v355
    %512 = vst.msk [vmem:[#allocation7 + $0x20] sm:$0xff] %vm72, %v425
    %513 = vst.msk [vmem:[#allocation7 + $0x28] sm:$0xff] %vm72, %v430
    %514 = vst.msk [vmem:[#allocation7 + $0x30] sm:$0xff] %vm72, %v500
    %515 = vst.msk [vmem:[#allocation7 + $0x38] sm:$0xff] %vm72, %v505
    // Predicated region
    $region10: #{tpu_custom_call.1} parent=1 // pred_check
      _
    $region11: #{tpu_custom_call.1} parent=1 // pred_check_branch
      %517 = sbr.rel (0) target = $region13
    $region12: #{tpu_custom_call.1} parent=1 // pred_region
      %s519 = ssub.s32 1024, 1024
      %520 = vsyncadd [#allocation6], %s519
      %s521 = sshll.u32 [#allocation7], 4
      %s522 = int_to_ptr.vmem [resolvable:$true] %s521
      %527 = dma.vmem_to_hbm [thread:$0]  %s522, 1024, %s2, [#allocation6], 128, 128, 8
    $region13: #{tpu_custom_call.1} parent=1 // pred_fallthru
      _
    // Predicated region
    $region14: #{tpu_custom_call.1} parent=1 // pred_check
      _
    $region15: #{tpu_custom_call.1} parent=1 // pred_check_branch
      %529 = sbr.rel (0) target = $region17
    $region16: #{tpu_custom_call.1} parent=1 // pred_region
      %530 = dma.done [#allocation6], 1024
    $region17: #{tpu_custom_call.1} parent=1 // pred_fallthru
      _
    %531 = vsyncpa [#allocation5], 1
    %532 = vsyncpa [#allocation6], 1

</llo_original>
